<compile_context>
chip_gen: v7x
topology: tpu7x:2x2x1
jax: 0.10.0
libtpu: 0.0.40
codegen_flags: <defaults>
</compile_context>

<pallas_src>
import functools

import jax
import jax.numpy as jnp
from jax.experimental import pallas as pl
from jax.experimental.pallas import tpu as pltpu


def _focal_loss_kernel(x_ref, t_ref, out_ref, acc_ref, *,
                       gamma, num_classes, hw, tl, steps):
    """Grid = (N, NCHUNKS, steps).

    x_ref:   (1, C, TL)   logits for sample n, spatial tile (C on sublanes,
                          spatial on lanes -> lane-dense).
    t_ref:   (1, 1, TL)   int32 target labels for the same tile.
    out_ref: (1, 1, 1)    per-(sample, chunk) partial sum of
                          (1-pt)^gamma * sum_c log_softmax(x)_c
                          (-alpha and the mean divisor are applied in the wrapper).
    acc_ref: (1, TL)      per-lane running partial sum (VMEM scratch).
    """
    c = pl.program_id(1)
    l = pl.program_id(2)

    @pl.when(l == 0)
    def _():
        acc_ref[...] = jnp.zeros_like(acc_ref)

    x = x_ref[0].astype(jnp.float32)        # (C, TL); cast in-register only
    t = t_ref[0]                            # (1, TL) int32

    # log-softmax pieces over the class axis (axis 0, C rows).
    m = jnp.max(x, axis=0, keepdims=True)                 # (1, TL)
    # TODO(synk): if v7x profiling shows the EUP slot saturated, compute this exp in
    # bf16 (keep the sum/log in f32) to double EUP throughput; left in f32 for now.
    e = jnp.exp(x - m)                                    # (C, TL) single full-tile exp
    lse = jnp.log(jnp.sum(e, axis=0, keepdims=True))      # (1, TL)

    # Fused one-hot gather of the target-class logit over the (small) class axis.
    # TODO(synk): out-of-range / ignore-index labels are not special-cased
    # (PyTorch's gather would raise); labels are assumed to lie in [0, C).
    row = jax.lax.broadcasted_iota(jnp.int32, x.shape, 0)             # (C, TL)
    x_t = jnp.sum(jnp.where(row == t, x, 0.0), axis=0, keepdims=True)  # (1, TL)

    lp_t = x_t - m - lse                    # log-prob of the true class
    pt = jnp.exp(lp_t)                      # (1, TL) cheap exp

    # sum_c log_softmax(x)_c == sum_c x_c - C * (m + lse)
    sum_lp = jnp.sum(x, axis=0, keepdims=True) - float(num_classes) * (m + lse)

    d = 1.0 - pt
    g = float(gamma)
    if g.is_integer() and 0 <= int(g) <= 8:
        w = jnp.ones_like(d)
        for _ in range(int(g)):             # gamma=3 -> 3 VPU multiplies, no pow on EUP
            w = w * d
    else:
        w = jnp.power(d, g)

    contrib = w * sum_lp

    # Mask lanes past the end of the spatial extent: the tail tile and any clamped
    # duplicate tile (from the chunked grid) contribute exactly zero.
    off = (c * steps + l) * tl
    lane = jax.lax.broadcasted_iota(jnp.int32, (1, tl), 1)
    valid = (off + lane) < hw
    acc_ref[...] += jnp.where(valid, contrib, 0.0)

    @pl.when(l == steps - 1)
    def _():
        out_ref[...] = jnp.sum(acc_ref[...], keepdims=True).reshape(1, 1, 1)


def _vmem_capacity_bytes():
    """Physical VMEM for the current chip; conservative (v7x-sized) fallback."""
    try:
        return int(pltpu.get_tpu_info().vmem_capacity_bytes)
    except Exception:
        return 64 * 1024 * 1024


def _pick_spatial_tile(hw, bytes_per_lane, t_itemsize, usable_vmem, want_tiles):
    """Largest lane-tile (multiple of 128) targeting ~8 MiB of logits per step."""
    target_x_bytes = 8 << 20     # DMA time per step >> ~0.35 us fixed overhead
    min_x_bytes = 1 << 20        # don't shrink below ~1 MiB just for chunking
    # Per-lane VMEM footprint: double-buffered logits + targets, plus f32 accumulator.
    vmem_per_lane = 2 * bytes_per_lane + 2 * t_itemsize + 4
    tl = min(target_x_bytes // bytes_per_lane,
             max(128, (usable_vmem - (4 << 20)) // vmem_per_lane))
    if want_tiles > 1:
        # Leave enough tiles for megacore sharding when N is small.
        per_chunk = -(-hw // want_tiles)
        per_chunk = max(per_chunk, min_x_bytes // bytes_per_lane)
        tl = min(tl, per_chunk)
    if hw <= tl:
        return hw                # single full-extent tile (full-dim block is legal)
    return max(128, (tl // 128) * 128)


def focal_loss(inputs, targets, alpha=0.8, gamma=3.0):
    """inputs: (N, C, H, W) float logits.  targets: (N, H, W) integer labels."""
    N, C, H, W = inputs.shape
    HW = H * W

    # Zero-copy views; no HBM transpose.  Spatial dim lands on the lane axis.
    x = inputs.reshape(N, C, HW)
    t = targets if targets.dtype == jnp.int32 else targets.astype(jnp.int32)
    t = t.reshape(N, 1, HW)

    x_item = jnp.dtype(x.dtype).itemsize
    t_item = jnp.dtype(t.dtype).itemsize
    bytes_per_lane = x_item * C

    usable_vmem = int(_vmem_capacity_bytes() * 3 // 4)   # headroom for compiler scratch

    # Aim for ~4 parallel (sample, chunk) units so both v7x TensorCores get work
    # even when N is 1 or odd; harmless on single-TC chips.
    want_tiles = max(1, -(-4 // N))

    TL = _pick_spatial_tile(HW, bytes_per_lane, t_item, usable_vmem, want_tiles)
    n_tiles = pl.cdiv(HW, TL)
    nchunks = min(want_tiles, n_tiles)
    steps = pl.cdiv(n_tiles, nchunks)

    # VMEM budget: double-buffered inputs + accumulator scratch + margin.
    x_tile_bytes = TL * C * x_item
    t_tile_bytes = TL * t_item
    budget = 2 * (x_tile_bytes + t_tile_bytes) + 4 * TL + (4 << 20)
    vmem_limit = int(min(usable_vmem, max(budget, 32 << 20)))

    kernel = functools.partial(
        _focal_loss_kernel, gamma=float(gamma), num_classes=C,
        hw=HW, tl=TL, steps=steps,
    )

    # Tile index is clamped to the last valid tile; the in-kernel mask zeroes any
    # duplicated contribution, so nchunks need not divide the tile count.
    def _in_map(n, c, l):
        return (n, 0, jnp.minimum(c * steps + l, n_tiles - 1))

    partials = pl.pallas_call(
        kernel,
        out_shape=jax.ShapeDtypeStruct((N, nchunks, 1), jnp.float32),
        grid_spec=pltpu.PrefetchScalarGridSpec(
            num_scalar_prefetch=0,
            grid=(N, nchunks, steps),
            in_specs=[
                pl.BlockSpec((1, C, TL), _in_map),
                pl.BlockSpec((1, 1, TL), _in_map),
            ],
            out_specs=pl.BlockSpec((1, 1, 1), lambda n, c, l: (n, c, 0)),
            scratch_shapes=[pltpu.VMEM((1, TL), jnp.float32)],
        ),
        compiler_params=pltpu.CompilerParams(
            # Samples and spatial chunks split across TensorCores; the inner spatial
            # axis accumulates into the resident scratch/output.
            dimension_semantics=("parallel", "parallel", "arbitrary"),
            vmem_limit_bytes=vmem_limit,
        ),
    )(x, t)

    # -alpha and the mean divisor applied once, outside the kernel.
    return (-float(alpha)) * jnp.sum(partials) / jnp.float32(N * C * H * W)


def _focal_loss_ref(inputs, targets, alpha=0.8, gamma=3.0):
    """Pure-JAX reference matching the PyTorch module."""
    log_probs = jax.nn.log_softmax(inputs, axis=1)                   # (N, C, H, W)
    probs = jnp.exp(log_probs)
    pt = jnp.take_along_axis(probs, targets[:, None, :, :], axis=1)  # (N, 1, H, W)
    fl = -alpha * jnp.power(1.0 - pt, gamma) * log_probs
    return jnp.mean(fl)


if __name__ == "__main__":
    key = jax.random.PRNGKey(0)
    k_x, k_t = jax.random.split(key)

    N, C, H, W = 2, 4, 16, 16
    inputs = jax.random.normal(k_x, (N, C, H, W), dtype=jnp.float32)
    targets = jax.random.randint(k_t, (N, H, W), 0, C, dtype=jnp.int32)

    loss = focal_loss(inputs, targets, alpha=0.8, gamma=3.0)
    jax.block_until_ready(loss)

    ref = _focal_loss_ref(inputs, targets, alpha=0.8, gamma=3.0)
    assert jnp.allclose(loss, ref, rtol=1e-5, atol=1e-5), (loss, ref)

    print("KERNEL_OK")
</pallas_src>

<mosaic_0001>
module attributes {stable_mosaic.version = 11 : i64} {
  func.func @_focal_loss_kernel(%arg0: i32, %arg1: i32, %arg2: i32, %arg3: memref<1x4x256xf32, #tpu.memory_space<vmem>>, %arg4: memref<1x1x256xi32, #tpu.memory_space<vmem>>, %arg5: memref<1x1x1xf32, #tpu.memory_space<vmem>>, %arg6: memref<1x256xf32, #tpu.memory_space<vmem>>) attributes {dimension_semantics = [#tpu.dimension_semantics<parallel>, #tpu.dimension_semantics<parallel>, #tpu.dimension_semantics<arbitrary>], iteration_bounds = array<i64: 2, 1, 1>, scalar_prefetch = 0 : i64, scratch_operands = 1 : i64, tpu.core_type = #tpu.core_type<tc>, window_params = [{transform_indices = @transform_0, window_bounds = array<i64: 1, 4, 256>}, {transform_indices = @transform_1, window_bounds = array<i64: 1, 1, 256>}, {transform_indices = @transform_2, window_bounds = array<i64: 1, 1, 1>}]} {
    %c0_i32 = arith.constant 0 : i32
    %0 = arith.cmpi eq, %arg2, %c0_i32 : i32
    %1 = arith.extui %0 : i1 to i32
    %c0_i32_0 = arith.constant 0 : i32
    %2 = arith.cmpi ne, %1, %c0_i32_0 : i32
    scf.if %2 {
      %cst_21 = arith.constant 0.000000e+00 : f32
      %54 = vector.broadcast %cst_21 : f32 to vector<1x256xf32>
      %c0_22 = arith.constant 0 : index
      %c0_23 = arith.constant 0 : index
      %55 = vector.load %arg6[%c0_22, %c0_23] : memref<1x256xf32, #tpu.memory_space<vmem>>, vector<1x256xf32>
      tpu.vector_store %arg6[%c0_22, %c0_23], %54 {strides = array<i32>} : memref<1x256xf32, #tpu.memory_space<vmem>>, vector<1x256xf32>,
    } else {
    }
    %c0 = arith.constant 0 : index
    %c0_1 = arith.constant 0 : index
    %c0_2 = arith.constant 0 : index
    %3 = vector.load %arg3[%c0, %c0_1, %c0_2] : memref<1x4x256xf32, #tpu.memory_space<vmem>>, vector<1x4x256xf32>
    %4 = vector.shape_cast %3 : vector<1x4x256xf32> to vector<4x256xf32>
    %c0_3 = arith.constant 0 : index
    %c0_4 = arith.constant 0 : index
    %c0_5 = arith.constant 0 : index
    %5 = vector.load %arg4[%c0_3, %c0_4, %c0_5] : memref<1x1x256xi32, #tpu.memory_space<vmem>>, vector<1x1x256xi32>
    %6 = vector.shape_cast %5 : vector<1x1x256xi32> to vector<1x256xi32>
    %cst = arith.constant dense<0xFF800000> : vector<256xf32>
    %7 = vector.multi_reduction <maximumf>, %4, %cst [0] : vector<4x256xf32> to vector<256xf32>
    %8 = vector.shape_cast %7 : vector<256xf32> to vector<1x256xf32>
    %9 = vector.broadcast %8 : vector<1x256xf32> to vector<4x256xf32>
    %10 = arith.subf %4, %9 : vector<4x256xf32>
    %11 = math.exp %10 : vector<4x256xf32>
    %cst_6 = arith.constant dense<0.000000e+00> : vector<256xf32>
    %12 = vector.multi_reduction <add>, %11, %cst_6 [0] : vector<4x256xf32> to vector<256xf32>
    %13 = vector.shape_cast %12 : vector<256xf32> to vector<1x256xf32>
    %14 = math.log %13 : vector<1x256xf32>
    %15 = tpu.iota {dimensions = array<i32: 0>} : vector<4x256xi32>
    %16 = vector.broadcast %6 : vector<1x256xi32> to vector<4x256xi32>
    %17 = arith.cmpi eq, %15, %16 : vector<4x256xi32>
    %cst_7 = arith.constant 0.000000e+00 : f32
    %18 = vector.broadcast %cst_7 : f32 to vector<4x256xf32>
    %19 = arith.select %17, %4, %18 : vector<4x256xi1>, vector<4x256xf32>
    %cst_8 = arith.constant dense<0.000000e+00> : vector<256xf32>
    %20 = vector.multi_reduction <add>, %19, %cst_8 [0] : vector<4x256xf32> to vector<256xf32>
    %21 = vector.shape_cast %20 : vector<256xf32> to vector<1x256xf32>
    %22 = arith.subf %21, %8 : vector<1x256xf32>
    %23 = arith.subf %22, %14 : vector<1x256xf32>
    %24 = math.exp %23 : vector<1x256xf32>
    %cst_9 = arith.constant dense<0.000000e+00> : vector<256xf32>
    %25 = vector.multi_reduction <add>, %4, %cst_9 [0] : vector<4x256xf32> to vector<256xf32>
    %26 = vector.shape_cast %25 : vector<256xf32> to vector<1x256xf32>
    %27 = arith.addf %8, %14 : vector<1x256xf32>
    %cst_10 = arith.constant 4.000000e+00 : f32
    %28 = vector.broadcast %cst_10 : f32 to vector<1x256xf32>
    %29 = arith.mulf %28, %27 : vector<1x256xf32>
    %30 = arith.subf %26, %29 : vector<1x256xf32>
    %cst_11 = arith.constant 1.000000e+00 : f32
    %31 = vector.broadcast %cst_11 : f32 to vector<1x256xf32>
    %32 = arith.subf %31, %24 : vector<1x256xf32>
    %cst_12 = arith.constant 1.000000e+00 : f32
    %33 = vector.broadcast %cst_12 : f32 to vector<1x256xf32>
    %34 = arith.mulf %33, %32 : vector<1x256xf32>
    %35 = arith.mulf %34, %32 : vector<1x256xf32>
    %36 = arith.mulf %35, %32 : vector<1x256xf32>
    %37 = arith.mulf %36, %30 : vector<1x256xf32>
    %c1_i32 = arith.constant 1 : i32
    %38 = arith.muli %arg1, %c1_i32 : i32
    %39 = arith.addi %38, %arg2 : i32
    %c256_i32 = arith.constant 256 : i32
    %40 = arith.muli %39, %c256_i32 : i32
    %41 = tpu.iota {dimensions = array<i32: 1>} : vector<1x256xi32>
    %42 = vector.broadcast %40 : i32 to vector<1x256xi32>
    %43 = arith.addi %42, %41 : vector<1x256xi32>
    %c256_i32_13 = arith.constant 256 : i32
    %44 = vector.broadcast %c256_i32_13 : i32 to vector<1x256xi32>
    %45 = arith.cmpi slt, %43, %44 : vector<1x256xi32>
    %c0_14 = arith.constant 0 : index
    %c0_15 = arith.constant 0 : index
    %46 = vector.load %arg6[%c0_14, %c0_15] : memref<1x256xf32, #tpu.memory_space<vmem>>, vector<1x256xf32>
    %cst_16 = arith.constant 0.000000e+00 : f32
    %47 = vector.broadcast %cst_16 : f32 to vector<1x256xf32>
    %48 = arith.select %45, %37, %47 : vector<1x256xi1>, vector<1x256xf32>
    %49 = arith.addf %46, %48 : vector<1x256xf32>
    %c0_17 = arith.constant 0 : index
    %c0_18 = arith.constant 0 : index
    %50 = vector.load %arg6[%c0_17, %c0_18] : memref<1x256xf32, #tpu.memory_space<vmem>>, vector<1x256xf32>
    tpu.vector_store %arg6[%c0_17, %c0_18], %49 {strides = array<i32>} : memref<1x256xf32, #tpu.memory_space<vmem>>, vector<1x256xf32>,
    %c0_i32_19 = arith.constant 0 : i32
    %51 = arith.cmpi eq, %arg2, %c0_i32_19 : i32
    %52 = arith.extui %51 : i1 to i32
    %c0_i32_20 = arith.constant 0 : i32
    %53 = arith.cmpi ne, %52, %c0_i32_20 : i32
    scf.if %53 {
      %c0_21 = arith.constant 0 : index
      %c0_22 = arith.constant 0 : index
      %54 = vector.load %arg6[%c0_21, %c0_22] : memref<1x256xf32, #tpu.memory_space<vmem>>, vector<1x256xf32>
      %55 = vector.shape_cast %54 : vector<1x256xf32> to vector<1x1x256xf32>
      %cst_23 = arith.constant dense<0.000000e+00> : vector<1xf32>
      %56 = vector.multi_reduction <add>, %55, %cst_23 [1, 2] : vector<1x1x256xf32> to vector<1xf32>
      %57 = vector.shape_cast %56 : vector<1xf32> to vector<1x1x1xf32>
      %58 = vector.extract %57[0, 0, 0] : f32 from vector<1x1x1xf32>
      %59 = vector.broadcast %58 : f32 to vector<1x1xf32>
      %60 = vector.shape_cast %59 : vector<1x1xf32> to vector<1x1x1xf32>
      %c0_24 = arith.constant 0 : index
      %c0_25 = arith.constant 0 : index
      %c0_26 = arith.constant 0 : index
      %61 = vector.load %arg5[%c0_24, %c0_25, %c0_26] : memref<1x1x1xf32, #tpu.memory_space<vmem>>, vector<1x1x1xf32>
      tpu.vector_store %arg5[%c0_24, %c0_25, %c0_26], %60 {strides = array<i32>} : memref<1x1x1xf32, #tpu.memory_space<vmem>>, vector<1x1x1xf32>,
    } else {
    }
    return
  }
  func.func @transform_0(%arg0: i32, %arg1: i32, %arg2: i32) -> (i32, i32, i32) {
    %c1_i32 = arith.constant 1 : i32
    %0 = arith.muli %arg1, %c1_i32 : i32
    %1 = arith.addi %0, %arg2 : i32
    %c0_i32 = arith.constant 0 : i32
    %2 = arith.minsi %1, %c0_i32 : i32
    %c0_i32_0 = arith.constant 0 : i32
    %c0_i32_1 = arith.constant 0 : i32
    return %arg0, %c0_i32_0, %2 : i32, i32, i32
  }
  func.func @transform_1(%arg0: i32, %arg1: i32, %arg2: i32) -> (i32, i32, i32) {
    %c1_i32 = arith.constant 1 : i32
    %0 = arith.muli %arg1, %c1_i32 : i32
    %1 = arith.addi %0, %arg2 : i32
    %c0_i32 = arith.constant 0 : i32
    %2 = arith.minsi %1, %c0_i32 : i32
    %c0_i32_0 = arith.constant 0 : i32
    %c0_i32_1 = arith.constant 0 : i32
    return %arg0, %c0_i32_0, %2 : i32, i32, i32
  }
  func.func @transform_2(%arg0: i32, %arg1: i32, %arg2: i32) -> (i32, i32, i32) {
    %c0_i32 = arith.constant 0 : i32
    %c0_i32_0 = arith.constant 0 : i32
    return %arg0, %arg1, %c0_i32 : i32, i32, i32
  }
}

</mosaic_0001>

<llo_original>
// kernel: tpu_custom_call.1
$region0: #{tpu_custom_call.1}
  #allocation0 [shape = 'u32[]', space=smem, size = 0x4, offset = 0x4, fixed_abs, tag = 'smem constant byte address 0x4 - core index']
  #allocation1 [shape = 'u32[144,128]{1,0:T(1,128)}', space=vmem, size = 0x12000, scoped, tag = 'internal scratch']
  #allocation2 [shape = 'f32[1,256]{1,0:T(1,128)}', space=vmem, size = 0x400, scoped, tag = 'scratch operand']
  %s0 = inlined_call_operand.hbm [shape: f32[2,4,256], index: 0, kind: input, shape index: {}]
  %s1 = inlined_call_operand.hbm [shape: s32[2,1,256], index: 1, kind: input, shape index: {}]
  %s2 = inlined_call_operand.vmem [shape: f32[2,1,1], index: 2, kind: output, shape index: {}]
  %s3 = sld [smem:[#allocation0]]
  $region57: #{tpu_custom_call.1} parent=0
    _
  %s5 = ssub.s32 1, %s3
  %s6 = scalar_select 0, %s5, %s3
  $region1: #{tpu_custom_call.1} parent=0
    #allocation3 [shape = 'u8[8192]{0}', space=vmem, size = 0x2000, scoped, tag = 'input window, operand 0']
    #allocation4 [shape = 's32[2]{0}', space=sflag, size = 0x8, scoped, tag = 'scoped memory for tpu_custom_call.1']
    #allocation5 [shape = 'u8[2048]{0}', space=vmem, size = 0x800, scoped, tag = 'input window, operand 1']
    #allocation6 [shape = 's32[2]{0}', space=sflag, size = 0x8, scoped, tag = 'scoped memory for tpu_custom_call.1']
    %7 = vsyncpa [#allocation4], 0
    %s8 = scalar_lea.sflag [#allocation4], 1
    %9 = vsyncpa %s8, 0
    %10 = vsyncpa [#allocation6], 0
    %s11 = scalar_lea.sflag [#allocation6], 1
    %12 = vsyncpa %s11, 0
    loop: start=0, step=1, limit=4
    $region2: #{tpu_custom_call.1} parent=1 // loop_pre_header
      _
    $region3: #{tpu_custom_call.1} parent=1 // loop_header
      %s14 = sphi 0, %s18
      %p15 = scmp.ge.s32.totalorder %s14, 4
      %s21 = sphi 0, %s40
      %s22 = sphi 0, %s36
      %s23 = sphi 0, %s32
      %s24 = sphi 0, %s21
      %s25 = sphi 0, %s22
      %s26 = sphi 0, %s23
      %s27 = sphi 0, %s24
      %s28 = sphi 0, %s25
      %s29 = sphi 0, %s26
      %s51 = sphi 0, %s53
      %s54 = sphi 0, %s51
      %s55 = sphi 0, %s54
      %s71 = sphi 0, %s55
      %s85 = sphi 0, %s87
      %s88 = sphi 0, %s85
      %s89 = sphi 0, %s88
      %s105 = sphi 0, %s89
      %s113 = sphi 0, %s115
      %s116 = sphi 0, %s113
      %s117 = sphi 0, %s116
      %s133 = sphi 0, %s117
    $region4: #{tpu_custom_call.1} parent=1 // loop_header_branch
      %17 = sbr.rel (%p15) target = $region8
    $region5: #{tpu_custom_call.1} parent=1 // loop_body
      %s19 = ssub.s32 %s14, 1
      %s20 = ssub.s32 %s14, 2
      %s30 = sadd.s32 1, %s23
      %p31 = scmp.ge.s32.totalorder %s30, 1
      %s32 = scalar_select %p31, 0, %s30
      %s33 = sadd.s32 1, %s22
      %s34 = scalar_select %p31, %s33, %s22
      %p35 = scmp.ge.s32.totalorder %s34, 1
      %s36 = scalar_select %p35, 0, %s34
      %s37 = sadd.s32 1, %s21
      %s38 = scalar_select %p35, %s37, %s21
      %p39 = scmp.ge.s32.totalorder %s38, 2
      %s40 = scalar_select %p39, 0, %s38
      %s41 = sadd.s32 %s22, %s23
      %p42 = scmp.lt.s32.totalorder %s41, 0
      %s43 = scalar_select %p42, %s41, 0
      %s44 = sadd.s32 %s36, %s32
      %p45 = scmp.lt.s32.totalorder %s44, 0
      %s46 = scalar_select %p45, %s44, 0
      %s47 = ssub.s32 %s21, %s40
      %s48 = ssub.s32 %s43, %s46
      %s49 = sor.u32 %s47, %s48
      %p50 = scmp.eq.s32.totalorder %s49, 0
      %s52 = sadd.s32 %s51, 1
      %s53 = scalar_select %p50, %s51, %s52
      %p56 = pneg %p50
      %p57 = scmp.eq.s32.totalorder %s14, 1
      %p58 = por %p56, %p57
      %p59 = scmp.ne.s32.totalorder %s51, %s54
      %p60 = scmp.eq.s32.totalorder %s14, 0
      %p61 = por %p59, %p60
      %p62 = scmp.ne.s32.totalorder %s51, %s54
      %p63 = scmp.eq.s32.totalorder %s19, 1
      %p64 = por %p62, %p63
      %p65 = scmp.ne.s32.totalorder %s54, %s55
      %p66 = scmp.eq.s32.totalorder %s19, 0
      %p67 = por %p65, %p66
      %p68 = scmp.ne.s32.totalorder %s54, %s55
      %p69 = scmp.eq.s32.totalorder %s20, 1
      %p70 = por %p68, %p69
      %p72 = scmp.ne.s32.totalorder %s55, %s71
      %p73 = scmp.eq.s32.totalorder %s20, 0
      %p74 = por %p72, %p73
      %s75 = sadd.s32 %s22, %s23
      %p76 = scmp.lt.s32.totalorder %s75, 0
      %s77 = scalar_select %p76, %s75, 0
      %s78 = sadd.s32 %s36, %s32
      %p79 = scmp.lt.s32.totalorder %s78, 0
      %s80 = scalar_select %p79, %s78, 0
      %s81 = ssub.s32 %s21, %s40
      %s82 = ssub.s32 %s77, %s80
      %s83 = sor.u32 %s81, %s82
      %p84 = scmp.eq.s32.totalorder %s83, 0
      %s86 = sadd.s32 %s85, 1
      %s87 = scalar_select %p84, %s85, %s86
      %p90 = pneg %p84
      %p91 = scmp.eq.s32.totalorder %s14, 1
      %p92 = por %p90, %p91
      %p93 = scmp.ne.s32.totalorder %s85, %s88
      %p94 = scmp.eq.s32.totalorder %s14, 0
      %p95 = por %p93, %p94
      %p96 = scmp.ne.s32.totalorder %s85, %s88
      %p97 = scmp.eq.s32.totalorder %s19, 1
      %p98 = por %p96, %p97
      %p99 = scmp.ne.s32.totalorder %s88, %s89
      %p100 = scmp.eq.s32.totalorder %s19, 0
      %p101 = por %p99, %p100
      %p102 = scmp.ne.s32.totalorder %s88, %s89
      %p103 = scmp.eq.s32.totalorder %s20, 1
      %p104 = por %p102, %p103
      %p106 = scmp.ne.s32.totalorder %s89, %s105
      %p107 = scmp.eq.s32.totalorder %s20, 0
      %p108 = por %p106, %p107
      %s109 = ssub.s32 %s21, %s40
      %s110 = ssub.s32 %s22, %s36
      %s111 = sor.u32 %s109, %s110
      %p112 = scmp.eq.s32.totalorder %s111, 0
      %s114 = sadd.s32 %s113, 1
      %s115 = scalar_select %p112, %s113, %s114
      %p118 = pneg %p112
      %p119 = scmp.eq.s32.totalorder %s14, 1
      %p120 = por %p118, %p119
      %p121 = scmp.ne.s32.totalorder %s113, %s116
      %p122 = scmp.eq.s32.totalorder %s14, 0
      %p123 = por %p121, %p122
      %p124 = scmp.ne.s32.totalorder %s113, %s116
      %p125 = scmp.eq.s32.totalorder %s19, 1
      %p126 = por %p124, %p125
      %p127 = scmp.ne.s32.totalorder %s116, %s117
      %p128 = scmp.eq.s32.totalorder %s19, 0
      %p129 = por %p127, %p128
      %p130 = scmp.ne.s32.totalorder %s116, %s117
      %p131 = scmp.eq.s32.totalorder %s20, 1
      %p132 = por %p130, %p131
      %p134 = scmp.ne.s32.totalorder %s117, %s133
      %p135 = scmp.eq.s32.totalorder %s20, 0
      %p136 = por %p134, %p135
      %p137 = scmp.le.s32.totalorder 1, %s14
      %p138 = scmp.lt.s32.totalorder %s14, 3
      %p139 = pnand %p137, %p138
      %p140 = pneg %p139
      // Predicated region
      $region9: #{tpu_custom_call.1} parent=5 // pred_check
        _
      $region10: #{tpu_custom_call.1} parent=5 // pred_check_branch
        %142 = sbr.rel (%p139) target = $region12
      $region11: #{tpu_custom_call.1} parent=5 // pred_region
        %s143 = ssub.s32 %s14, 1
      $region12: #{tpu_custom_call.1} parent=5 // pred_fallthru
        _
      %p144 = scmp.lt.s32.totalorder %s14, 2
      // Predicated region
      $region13: #{tpu_custom_call.1} parent=5 // pred_check
        %p145 = pneg %p144
      $region14: #{tpu_custom_call.1} parent=5 // pred_check_branch
        %147 = sbr.rel (%p145) target = $region16
      $region15: #{tpu_custom_call.1} parent=5 // pred_region
        // Predicated region
        $region17: #{tpu_custom_call.1} parent=15 // pred_check
          %p148 = pneg %p61
        $region18: #{tpu_custom_call.1} parent=15 // pred_check_branch
          %150 = sbr.rel (%p148) target = $region20
        $region19: #{tpu_custom_call.1} parent=15 // pred_region
          %s151 = sand.u32 %s51, 1
          %s152 = scalar_lea.sflag [#allocation4], %s151
          %s153 = sand.u32 %s51, 1
          %s154 = smul.addr %s153, 8
          %s155 = scalar_lea.vmem [#allocation3], %s154
          %s156 = sadd.s32 %s22, %s23
          %p157 = scmp.lt.s32.totalorder %s156, 0
          %s158 = scalar_select %p157, %s156, 0
          %s159 = smul.u32 2, %s158
          %s161 = ssub.s32 128, 128
          %162 = vsyncadd %s152, %s161
          %s163 = smul.addr %s21, 2
          %s164 = sadd.s32 %s159, %s163
          %s165 = smul.addr %s164, 64
          %s166 = scalar_lea.hbm %s0, %s165
          %s168 = sshll.u32 %s155, 4
          %s169 = int_to_ptr.vmem [resolvable:$true] %s168
          %171 = dma.hbm_to_vmem [thread:$0]  %s166, 128, %s169, %s152
        $region20: #{tpu_custom_call.1} parent=15 // pred_fallthru
          _
        // Predicated region
        $region21: #{tpu_custom_call.1} parent=15 // pred_check
          %p172 = pneg %p95
        $region22: #{tpu_custom_call.1} parent=15 // pred_check_branch
          %174 = sbr.rel (%p172) target = $region24
        $region23: #{tpu_custom_call.1} parent=15 // pred_region
          %s175 = sand.u32 %s85, 1
          %s176 = scalar_lea.sflag [#allocation6], %s175
          %s177 = sand.u32 %s85, 1
          %s178 = smul.addr %s177, 2
          %s179 = scalar_lea.vmem [#allocation5], %s178
          %s180 = sadd.s32 %s22, %s23
          %p181 = scmp.lt.s32.totalorder %s180, 0
          %s182 = scalar_select %p181, %s180, 0
          %s183 = smul.u32 2, %s182
          %s185 = ssub.s32 32, 32
          %186 = vsyncadd %s176, %s185
          %s187 = smul.addr %s21, 2
          %s188 = sadd.s32 %s183, %s187
          %s189 = smul.addr %s188, 16
          %s190 = scalar_lea.hbm %s1, %s189
          %s192 = sshll.u32 %s179, 4
          %s193 = int_to_ptr.vmem [resolvable:$true] %s192
          %195 = dma.hbm_to_vmem [thread:$0]  %s190, 32, %s193, %s176
        $region24: #{tpu_custom_call.1} parent=15 // pred_fallthru
          _
      $region16: #{tpu_custom_call.1} parent=5 // pred_fallthru
        _
      %p196 = scmp.le.s32.totalorder 1, %s14
      %p197 = scmp.lt.s32.totalorder %s14, 3
      %p198 = pnand %p196, %p197
      %p199 = pneg %p198
      // Predicated region
      $region25: #{tpu_custom_call.1} parent=5 // pred_check
        _
      $region26: #{tpu_custom_call.1} parent=5 // pred_check_branch
        %201 = sbr.rel (%p198) target = $region28
      $region27: #{tpu_custom_call.1} parent=5 // pred_region
        %s202 = ssub.s32 %s14, 1
        %s203 = sand.u32 %s54, 1
        %s204 = scalar_lea.sflag [#allocation4], %s203
        %s205 = sand.u32 %s54, 1
        %s206 = smul.addr %s205, 8
        %s207 = scalar_lea.vmem [#allocation3], %s206
        // Predicated region
        $region29: #{tpu_custom_call.1} parent=27 // pred_check
          %p208 = pneg %p67
        $region30: #{tpu_custom_call.1} parent=27 // pred_check_branch
          %210 = sbr.rel (%p208) target = $region32
        $region31: #{tpu_custom_call.1} parent=27 // pred_region
          %211 = dma.done %s204, 128
        $region32: #{tpu_custom_call.1} parent=27 // pred_fallthru
          _
        %s212 = sand.u32 %s88, 1
        %s213 = scalar_lea.sflag [#allocation6], %s212
        %s214 = sand.u32 %s88, 1
        %s215 = smul.addr %s214, 2
        %s216 = scalar_lea.vmem [#allocation5], %s215
        // Predicated region
        $region33: #{tpu_custom_call.1} parent=27 // pred_check
          %p217 = pneg %p101
        $region34: #{tpu_custom_call.1} parent=27 // pred_check_branch
          %219 = sbr.rel (%p217) target = $region36
        $region35: #{tpu_custom_call.1} parent=27 // pred_region
          %220 = dma.done %s213, 32
        $region36: #{tpu_custom_call.1} parent=27 // pred_fallthru
          _
        %s221 = sand.u32 %s54, 1
        %s222 = scalar_lea.sflag [#allocation4], %s221
        %s223 = sand.u32 %s54, 1
        %s224 = smul.addr %s223, 8
        %s225 = scalar_lea.vmem [#allocation3], %s224
        %p226 = pneg %p67
        %p227 = pneg %p64
        %s228 = sand.u32 %s88, 1
        %s229 = scalar_lea.sflag [#allocation6], %s228
        %s230 = sand.u32 %s88, 1
        %s231 = smul.addr %s230, 2
        %s232 = scalar_lea.vmem [#allocation5], %s231
        %p233 = pneg %p101
        %p234 = pneg %p98
        %p235 = pneg %p129
        %p236 = pneg %p126
        %p237 = scmp.lt.s32.totalorder %s24, 1
        %s238 = scalar_select %p237, %s24, 1
        %p239 = scmp.lt.s32.totalorder %s25, 0
        %s240 = scalar_select %p239, %s25, 0
        %s241 = sadd.s32 %s240, %s238
        %s242 = scalar_lea.vmem %s2, %s241
        %s243 = sadd.s32 %s25, %s26
        %p244 = scmp.lt.s32.totalorder %s243, 0
        %s245 = scalar_select %p244, %s243, 0
        %s246 = smul.u32 2, %s245
        %s247 = sadd.s32 %s25, %s26
        %p248 = scmp.lt.s32.totalorder %s247, 0
        %s249 = scalar_select %p248, %s247, 0
        %s250 = smul.u32 2, %s249
        %p251 = scmp.lt.s32.totalorder %s24, 1
        %s252 = scalar_select %p251, %s24, 1
        %p253 = scmp.lt.s32.totalorder %s25, 0
        %s254 = scalar_select %p253, %s25, 0
        %s255 = sadd.s32 %s254, %s252
        %s256 = scalar_lea.vmem %s2, %s255
        %p257 = scmp.eq.s32.totalorder %s26, 0
        // Predicated region
        $region37: #{tpu_custom_call.1} parent=27 // pred_check
          %p258 = pneg %p257
        $region38: #{tpu_custom_call.1} parent=27 // pred_check_branch
          %260 = sbr.rel (%p258) target = $region40
        $region39: #{tpu_custom_call.1} parent=27 // pred_region
          %v261 = vlaneseq
          %vm262 = vcmp.ge.s32.totalorder %v261, 0
          %vm263 = vcmp.lt.s32.totalorder %v261, 256
          %vm264 = vmand %vm262, %vm263
          %265 = vst.msk [vmem:[#allocation2] sm:$0x3] %vm264, 0.0
        $region40: #{tpu_custom_call.1} parent=27 // pred_fallthru
          _
        %v266 = vld [vmem:[%s207] sm:$0xff]
        %v267 = vld [vmem:[%s216] sm:$0x3]
        %v269 = vcombine.high %v266, %v266
        %vm271 = vcmask 1043456
        %v272 = vsel %vm271, %v266, -inf
        %v273 = vrot.slane %v272, 4
        %v274 = vmax.f32 %v272, %v273
        %v275 = vrot.slane %v274, 2
        %v276 = vmax.f32 %v274, %v275
        %v277 = vrot.slane %v276, 1
        %v278 = vmax.f32 %v276, %v277
        %v279 = vsel %vm271, %v269, -inf
        %v280 = vrot.slane %v279, 4
        %v281 = vmax.f32 %v279, %v280
        %v282 = vrot.slane %v281, 2
        %v283 = vmax.f32 %v281, %v282
        %v284 = vrot.slane %v283, 1
        %v285 = vmax.f32 %v283, %v284
        %v288 = vcombine.low %v278, %v285
        %v290 = vsub.f32 %v266, %v288
        %v291 = vmul.f32 %v290, 1.442695
        %v292 = vpow.pop %v291
        %v294 = vcombine.high %v292, %v292
        %v296 = vsel %vm271, %v292, 0.0
        %v297 = vrot.slane %v296, 4
        %v298 = vadd.f32 %v296, %v297
        %v299 = vrot.slane %v298, 2
        %v300 = vadd.f32 %v298, %v299
        %v301 = vrot.slane %v300, 1
        %v302 = vadd.f32 %v300, %v301
        %v303 = vsel %vm271, %v294, 0.0
        %v304 = vrot.slane %v303, 4
        %v305 = vadd.f32 %v303, %v304
        %v306 = vrot.slane %v305, 2
        %v307 = vadd.f32 %v305, %v306
        %v308 = vrot.slane %v307, 1
        %v309 = vadd.f32 %v307, %v308
        %v310 = vlog2.pop %v302
        %v311 = vmul.f32 %v310, 0.6931472
        %v312 = vlog2.pop %v309
        %v313 = vmul.f32 %v312, 0.6931472
        %v314 = vlaneseq
        %v315 = vshrl.u32 %v314, 7
        %v316 = vlaneseq
        %v317 = vshrl.u32 %v316, 7
        %v318 = vsub.s32 0, %v317
        %v319 = vrot.slane %v267, %v318
        %v320 = vlaneseq
        %v321 = vshrl.u32 %v320, 7
        %v322 = vsub.s32 1, %v321
        %v323 = vrot.slane %v267, %v322
        %vm324 = vcmp.eq.s32.totalorder %v315, %v319
        %vm325 = vcmp.eq.s32.totalorder %v315, %v323
        %v326 = vsel %vm324, %v266, 0.0
        %v327 = vsel %vm325, %v269, 0.0
        %v328 = vsel %vm271, %v326, 0.0
        %v329 = vrot.slane %v328, 4
        %v330 = vadd.f32 %v328, %v329
        %v331 = vrot.slane %v330, 2
        %v332 = vadd.f32 %v330, %v331
        %v333 = vrot.slane %v332, 1
        %v334 = vadd.f32 %v332, %v333
        %v335 = vsel %vm271, %v327, 0.0
        %v336 = vrot.slane %v335, 4
        %v337 = vadd.f32 %v335, %v336
        %v338 = vrot.slane %v337, 2
        %v339 = vadd.f32 %v337, %v338
        %v340 = vrot.slane %v339, 1
        %v341 = vadd.f32 %v339, %v340
        %v342 = vsub.f32 %v334, %v278
        %v343 = vsub.f32 %v341, %v285
        %v344 = vsub.f32 %v342, %v311
        %v345 = vsub.f32 %v343, %v313
        %v346 = vmul.f32 %v344, 1.442695
        %v347 = vpow.pop %v346
        %v348 = vmul.f32 %v345, 1.442695
        %v349 = vpow.pop %v348
        %v350 = vsel %vm271, %v266, 0.0
        %v351 = vrot.slane %v350, 4
        %v352 = vadd.f32 %v350, %v351
        %v353 = vrot.slane %v352, 2
        %v354 = vadd.f32 %v352, %v353
        %v355 = vrot.slane %v354, 1
        %v356 = vadd.f32 %v354, %v355
        %v357 = vsel %vm271, %v269, 0.0
        %v358 = vrot.slane %v357, 4
        %v359 = vadd.f32 %v357, %v358
        %v360 = vrot.slane %v359, 2
        %v361 = vadd.f32 %v359, %v360
        %v362 = vrot.slane %v361, 1
        %v363 = vadd.f32 %v361, %v362
        %v364 = vadd.f32 %v278, %v311
        %v365 = vadd.f32 %v285, %v313
        %v366 = vmul.f32 %v364, 4.0
        %v367 = vmul.f32 %v365, 4.0
        %v368 = vsub.f32 %v356, %v366
        %v369 = vsub.f32 %v363, %v367
        %v370 = vsub.f32 1.0, %v347
        %v371 = vsub.f32 1.0, %v349
        %v372 = vmul.f32 %v370, %v370
        %v373 = vmul.f32 %v371, %v371
        %v374 = vmul.f32 %v372, %v370
        %v375 = vmul.f32 %v373, %v371
        %v376 = vmul.f32 %v374, %v368
        %v377 = vmul.f32 %v375, %v369
        %s378 = sadd.s32 %s25, %s26
        %s379 = smul.u32 %s378, 256
        %v380 = vlaneseq
        %v381 = vand.u32 %v380, 127
        %v382 = vadd.s32 %v381, 128
        %v383 = vstv %s379
        %v384 = vadd.s32 %v383, %v381
        %v385 = vadd.s32 %v383, %v382
        %vm386 = vcmp.lt.s32.totalorder %v384, 256
        %vm387 = vcmp.lt.s32.totalorder %v385, 256
        %v388 = vld [vmem:[#allocation2] sm:$0x3]
        %v389 = vsel %vm386, %v376, 0.0
        %v390 = vsel %vm387, %v377, 0.0
        %v393 = vcombine.low %v389, %v390
        %v395 = vunpack.c.l.s4 1966171168
        %v396 = vunpack.c.0.s8 %v395
        %v397 = vlaneseq
        %v398 = vshrl.u32 %v397, 7
        %v399 = vsub.s32 %v396, %v398
        %v400 = vrot.slane %v393, %v399
        %v402 = vunpack.c.l.s4 1966171168
        %v403 = vunpack.c.0.s8 %v402
        %v404 = vlaneseq
        %v405 = vshrl.u32 %v404, 7
        %v406 = vsub.s32 %v403, %v405
        %v407 = vrot.slane %v400, %v406
        %v409 = vadd.f32 %v388, %v407
        %v410 = vlaneseq
        %vm411 = vcmp.ge.s32.totalorder %v410, 0
        %vm412 = vcmp.lt.s32.totalorder %v410, 256
        %vm413 = vmand %vm411, %vm412
        %414 = vst.msk [vmem:[#allocation2] sm:$0x3] %vm413, %v409
        // Predicated region
        $region41: #{tpu_custom_call.1} parent=27 // pred_check
          %p415 = pneg %p257
        $region42: #{tpu_custom_call.1} parent=27 // pred_check_branch
          %417 = sbr.rel (%p415) target = $region44
        $region43: #{tpu_custom_call.1} parent=27 // pred_region
          %v418 = vld [vmem:[#allocation2] sm:$0x3]
          %v420 = vlaneseq
          %v421 = vshrl.u32 %v420, 7
          %v422 = vsub.s32 0, %v421
          %v423 = vrot.slane %v418, %v422
          %v424 = vlaneseq
          %v425 = vshrl.u32 %v424, 7
          %v426 = vsub.s32 1, %v425
          %v427 = vrot.slane %v418, %v426
          %vm430 = vcmask 1040384
          %v431 = vsel %vm430, %v423, 0.0
          %v432 = vsel %vm430, %v427, 0.0
          %v433 = vadd.f32 %v431, %v432
          %434 = vadd.xlane.f32.xlu0 %v433
          %v435 = vpop.xlane.xlu0 %434
          %v436 = vrot.slane %v435, 4
          %v437 = vadd.f32 %v435, %v436
          %v438 = vrot.slane %v437, 2
          %v439 = vadd.f32 %v437, %v438
          %v440 = vrot.slane %v439, 1
          %v441 = vadd.f32 %v439, %v440
          %s442 = vtos %v441
          %v443 = vstv %s442
          %vm444 = vcmask 0
          %445 = vst.msk [vmem:[%s256] sm:$0x1] %vm444, %v443
        $region44: #{tpu_custom_call.1} parent=27 // pred_fallthru
          _
        %p446 = scmp.lt.s32.totalorder %s24, 1
        %s447 = scalar_select %p446, %s24, 1
        %p448 = scmp.lt.s32.totalorder %s25, 0
        %s449 = scalar_select %p448, %s25, 0
        %s450 = sadd.s32 %s449, %s447
        %s451 = scalar_lea.vmem %s2, %s450
        // Predicated region
        $region45: #{tpu_custom_call.1} parent=27 // pred_check
          %p452 = pneg %p126
        $region46: #{tpu_custom_call.1} parent=27 // pred_check_branch
          %454 = sbr.rel (%p452) target = $region48
        $region47: #{tpu_custom_call.1} parent=27 // pred_region
          _
        $region48: #{tpu_custom_call.1} parent=27 // pred_fallthru
          _
      $region28: #{tpu_custom_call.1} parent=5 // pred_fallthru
        _
      %p455 = scmp.le.s32.totalorder 2, %s14
      // Predicated region
      $region49: #{tpu_custom_call.1} parent=5 // pred_check
        %p456 = pneg %p455
      $region50: #{tpu_custom_call.1} parent=5 // pred_check_branch
        %458 = sbr.rel (%p456) target = $region52
      $region51: #{tpu_custom_call.1} parent=5 // pred_region
        %s459 = ssub.s32 %s14, 2
        // Predicated region
        $region53: #{tpu_custom_call.1} parent=51 // pred_check
          %p460 = pneg %p132
        $region54: #{tpu_custom_call.1} parent=51 // pred_check_branch
          %462 = sbr.rel (%p460) target = $region56
        $region55: #{tpu_custom_call.1} parent=51 // pred_region
          %p463 = scmp.lt.s32.totalorder %s27, 1
          %s464 = scalar_select %p463, %s27, 1
          %p465 = scmp.lt.s32.totalorder %s28, 0
          %s466 = scalar_select %p465, %s28, 0
          %s467 = sadd.s32 %s466, %s464
          %s468 = scalar_lea.vmem %s2, %s467
        $region56: #{tpu_custom_call.1} parent=51 // pred_fallthru
          _
      $region52: #{tpu_custom_call.1} parent=5 // pred_fallthru
        _
    $region6: #{tpu_custom_call.1} parent=1 // loop_footer
      %s18 = sadd.s32 1, %s14
    $region7: #{tpu_custom_call.1} parent=1 // loop_footer_branch
      %13 = sbr.rel target = $region3
    $region8: #{tpu_custom_call.1} parent=1 // loop_exit
      _
    %469 = vsyncpa [#allocation4], 1
    %s470 = scalar_lea.sflag [#allocation4], 1
    %471 = vsyncpa %s470, 1
    %472 = vsyncpa [#allocation6], 1
    %s473 = scalar_lea.sflag [#allocation6], 1
    %474 = vsyncpa %s473, 1

</llo_original>
